<compile_context>
chip_gen: v6e
topology: v6e:2x2x1
jax: 0.10.0
libtpu: 0.0.40
codegen_flags: <defaults>
</compile_context>

<pallas_src>
import jax
import jax.numpy as jnp
from jax import lax
from jax.experimental import pallas as pl
from jax.experimental.pallas import tpu as pltpu

ALPHA = 0.05
LANE = 128
MAX_TILE_ROWS = 2048   # 2048 * 128 * 4B = 1 MiB per input tile (f32)
NCORES = 2             # "parallel" axis for v7x megacore; extra loop step elsewhere


def _cdiv(a, b):
    return -(-a // b)


def _round_up(x, m):
    return _cdiv(x, m) * m


def _make_kernel(tile_rows, steps, n_elem, need_mask, inv_alpha):
    def kernel(pred_ref, true_ref, out_ref):
        c = pl.program_id(0)   # core / parallel axis
        i = pl.program_id(1)   # reduction axis (row tiles)

        @pl.when(i == 0)
        def _():
            out_ref[...] = jnp.zeros_like(out_ref)

        x = pred_ref[...].astype(jnp.float32)
        t = true_ref[...].astype(jnp.float32)

        # e = exp(-|x|) is shared between the stable BCE term and sigmoid.
        e = jnp.exp(-jnp.abs(x))
        # Numerically stable BCE-with-logits (reduction='none'):
        #   max(x, 0) - x*t + log(1 + exp(-|x|))
        loss = jnp.maximum(x, 0.0) - x * t + jnp.log1p(e)

        recip = pl.reciprocal(1.0 + e)              # exact reciprocal
        p = jnp.where(x >= 0, recip, e * recip)     # sigmoid(x) without a 2nd exp
        dx = p - t
        alpha_factor = 1.0 - jnp.exp((dx - 1.0) * inv_alpha)

        val = loss * alpha_factor

        if need_mask:
            # Global flat element index of each value in this tile; zero the
            # padded tail so it contributes nothing to the sum.  Cheap VPU work,
            # fully hidden under the HBM->VMEM DMA (kernel is memory-bound).
            row_base = (c * steps + i) * tile_rows
            row_idx = lax.broadcasted_iota(jnp.int32, val.shape, 0) + row_base
            lane_idx = lax.broadcasted_iota(jnp.int32, val.shape, 1)
            elem_idx = row_idx * LANE + lane_idx
            val = jnp.where(elem_idx < n_elem, val, 0.0)

        # Per-lane (8,128) accumulation: pure VPU adds, no per-step cross-lane
        # reduce and better f32 accumulation accuracy for large N.
        partial = val.reshape(tile_rows // 8, 8, LANE).sum(axis=0)
        out_ref[...] += partial[None, :, :]

    return kernel


def bce_blur_with_logits_loss(pred, true, alpha=ALPHA):
    """pred, true: same-shape arrays (e.g. NCHW logits / targets). Returns scalar mean loss."""
    assert pred.shape == true.shape
    n_elem = pred.size
    inv_alpha = 1.0 / (alpha + 1e-4)

    rows = _cdiv(n_elem, LANE)
    # Biggest tile that fits comfortably everywhere; multiple of 16 rows so bf16
    # inputs also satisfy the native (16,128) sublane tile.
    tile_rows = min(MAX_TILE_ROWS, _round_up(_cdiv(rows, NCORES), 16))
    steps = _cdiv(rows, NCORES * tile_rows)
    padded_rows = NCORES * steps * tile_rows
    padded_elems = padded_rows * LANE
    need_mask = padded_elems != n_elem

    def to2d(a):
        flat = a.reshape(-1)
        if padded_elems != n_elem:
            flat = jnp.pad(flat, (0, padded_elems - n_elem))
        return flat.reshape(padded_rows, LANE)

    pred2d = to2d(pred)
    true2d = to2d(true)

    kernel = _make_kernel(tile_rows, steps, n_elem, need_mask, inv_alpha)

    in_spec = pl.BlockSpec((tile_rows, LANE), lambda c, i: (c * steps + i, 0))

    partials = pl.pallas_call(
        kernel,
        out_shape=jax.ShapeDtypeStruct((NCORES, 8, LANE), jnp.float32),
        grid_spec=pltpu.PrefetchScalarGridSpec(
            num_scalar_prefetch=0,
            grid=(NCORES, steps),
            in_specs=[in_spec, in_spec],
            out_specs=pl.BlockSpec((1, 8, LANE), lambda c, i: (c, 0, 0)),
        ),
        compiler_params=pltpu.CompilerParams(
            dimension_semantics=("parallel", "arbitrary"),
        ),
    )(pred2d, true2d)

    # Tiny final cross-lane reduce (2*8*128 values) done outside the kernel.
    return jnp.sum(partials) / jnp.float32(n_elem)


def _reference(pred, true, alpha=ALPHA):
    x = pred.astype(jnp.float32)
    t = true.astype(jnp.float32)
    loss = jnp.maximum(x, 0.0) - x * t + jnp.log1p(jnp.exp(-jnp.abs(x)))
    p = jax.nn.sigmoid(x)
    dx = p - t
    af = 1.0 - jnp.exp((dx - 1.0) / (alpha + 1e-4))
    return jnp.mean(loss * af)


if __name__ == "__main__":
    key = jax.random.PRNGKey(0)
    k1, k2 = jax.random.split(key)
    # NCHW logits and 0/1 targets, small shapes: (2, 4, 16, 16)
    pred = jax.random.normal(k1, (2, 4, 16, 16), dtype=jnp.float32)
    true = (jax.random.uniform(k2, (2, 4, 16, 16)) > 0.5).astype(jnp.float32)

    out = bce_blur_with_logits_loss(pred, true)
    out = jax.block_until_ready(out)

    ref = _reference(pred, true)
    assert jnp.allclose(out, ref, rtol=5e-5, atol=1e-6), (out, ref)
    print("KERNEL_OK")
</pallas_src>

<mosaic_0001>
module attributes {stable_mosaic.version = 11 : i64} {
  func.func @kernel(%arg0: i32, %arg1: i32, %arg2: memref<16x128xf32, #tpu.memory_space<vmem>>, %arg3: memref<16x128xf32, #tpu.memory_space<vmem>>, %arg4: memref<1x8x128xf32, #tpu.memory_space<vmem>>) attributes {dimension_semantics = [#tpu.dimension_semantics<parallel>, #tpu.dimension_semantics<arbitrary>], iteration_bounds = array<i64: 2, 1>, scalar_prefetch = 0 : i64, scratch_operands = 0 : i64, tpu.core_type = #tpu.core_type<tc>, window_params = [{transform_indices = @transform_0, window_bounds = array<i64: 16, 128>}, {transform_indices = @transform_1, window_bounds = array<i64: 16, 128>}, {transform_indices = @transform_2, window_bounds = array<i64: 1, 8, 128>}]} {
    %c0_i32 = arith.constant 0 : i32
    %0 = arith.cmpi eq, %arg1, %c0_i32 : i32
    %1 = arith.extui %0 : i1 to i32
    %c0_i32_0 = arith.constant 0 : i32
    %2 = arith.cmpi ne, %1, %c0_i32_0 : i32
    scf.if %2 {
      %cst_18 = arith.constant 0.000000e+00 : f32
      %51 = vector.broadcast %cst_18 : f32 to vector<1x8x128xf32>
      %c0_19 = arith.constant 0 : index
      %c0_20 = arith.constant 0 : index
      %c0_21 = arith.constant 0 : index
      %52 = vector.load %arg4[%c0_19, %c0_20, %c0_21] : memref<1x8x128xf32, #tpu.memory_space<vmem>>, vector<1x8x128xf32>
      tpu.vector_store %arg4[%c0_19, %c0_20, %c0_21], %51 {strides = array<i32>} : memref<1x8x128xf32, #tpu.memory_space<vmem>>, vector<1x8x128xf32>,
    } else {
    }
    %c0 = arith.constant 0 : index
    %c0_1 = arith.constant 0 : index
    %3 = vector.load %arg2[%c0, %c0_1] : memref<16x128xf32, #tpu.memory_space<vmem>>, vector<16x128xf32>
    %c0_2 = arith.constant 0 : index
    %c0_3 = arith.constant 0 : index
    %4 = vector.load %arg3[%c0_2, %c0_3] : memref<16x128xf32, #tpu.memory_space<vmem>>, vector<16x128xf32>
    %5 = math.absf %3 : vector<16x128xf32>
    %cst = arith.constant 0.000000e+00 : f32
    %6 = vector.broadcast %cst : f32 to vector<16x128xf32>
    %7 = arith.subf %6, %5 : vector<16x128xf32>
    %8 = math.exp %7 : vector<16x128xf32>
    %cst_4 = arith.constant 0.000000e+00 : f32
    %9 = vector.broadcast %cst_4 : f32 to vector<16x128xf32>
    %10 = arith.maximumf %3, %9 : vector<16x128xf32>
    %11 = arith.mulf %3, %4 : vector<16x128xf32>
    %12 = arith.subf %10, %11 : vector<16x128xf32>
    %13 = math.log1p %8 : vector<16x128xf32>
    %14 = arith.addf %12, %13 : vector<16x128xf32>
    %cst_5 = arith.constant 1.000000e+00 : f32
    %15 = vector.broadcast %cst_5 : f32 to vector<16x128xf32>
    %16 = arith.addf %15, %8 : vector<16x128xf32>
    %17 = tpu.reciprocal %16 : vector<16x128xf32> -> vector<16x128xf32>
    %cst_6 = arith.constant 0.000000e+00 : f32
    %18 = vector.broadcast %cst_6 : f32 to vector<16x128xf32>
    %19 = arith.cmpf oge, %3, %18 : vector<16x128xf32>
    %20 = arith.mulf %8, %17 : vector<16x128xf32>
    %21 = arith.select %19, %17, %20 : vector<16x128xi1>, vector<16x128xf32>
    %22 = arith.subf %21, %4 : vector<16x128xf32>
    %cst_7 = arith.constant 1.000000e+00 : f32
    %23 = vector.broadcast %cst_7 : f32 to vector<16x128xf32>
    %24 = arith.subf %22, %23 : vector<16x128xf32>
    %cst_8 = arith.constant 19.9600792 : f32
    %25 = vector.broadcast %cst_8 : f32 to vector<16x128xf32>
    %26 = arith.mulf %24, %25 : vector<16x128xf32>
    %27 = math.exp %26 : vector<16x128xf32>
    %cst_9 = arith.constant 1.000000e+00 : f32
    %28 = vector.broadcast %cst_9 : f32 to vector<16x128xf32>
    %29 = arith.subf %28, %27 : vector<16x128xf32>
    %30 = arith.mulf %14, %29 : vector<16x128xf32>
    %c1_i32 = arith.constant 1 : i32
    %31 = arith.muli %arg0, %c1_i32 : i32
    %32 = arith.addi %31, %arg1 : i32
    %c16_i32 = arith.constant 16 : i32
    %33 = arith.muli %32, %c16_i32 : i32
    %34 = tpu.iota {dimensions = array<i32: 0>} : vector<16x128xi32>
    %35 = vector.broadcast %33 : i32 to vector<16x128xi32>
    %36 = arith.addi %34, %35 : vector<16x128xi32>
    %37 = tpu.iota {dimensions = array<i32: 1>} : vector<16x128xi32>
    %c128_i32 = arith.constant 128 : i32
    %38 = vector.broadcast %c128_i32 : i32 to vector<16x128xi32>
    %39 = arith.muli %36, %38 : vector<16x128xi32>
    %40 = arith.addi %39, %37 : vector<16x128xi32>
    %c2048_i32 = arith.constant 2048 : i32
    %41 = vector.broadcast %c2048_i32 : i32 to vector<16x128xi32>
    %42 = arith.cmpi slt, %40, %41 : vector<16x128xi32>
    %cst_10 = arith.constant 0.000000e+00 : f32
    %43 = vector.broadcast %cst_10 : f32 to vector<16x128xf32>
    %44 = arith.select %42, %30, %43 : vector<16x128xi1>, vector<16x128xf32>
    %45 = vector.shape_cast %44 : vector<16x128xf32> to vector<2x8x128xf32>
    %cst_11 = arith.constant dense<0.000000e+00> : vector<8x128xf32>
    %46 = vector.multi_reduction <add>, %45, %cst_11 [0] : vector<2x8x128xf32> to vector<8x128xf32>
    %c0_12 = arith.constant 0 : index
    %c0_13 = arith.constant 0 : index
    %c0_14 = arith.constant 0 : index
    %47 = vector.load %arg4[%c0_12, %c0_13, %c0_14] : memref<1x8x128xf32, #tpu.memory_space<vmem>>, vector<1x8x128xf32>
    %48 = vector.shape_cast %46 : vector<8x128xf32> to vector<1x8x128xf32>
    %49 = arith.addf %47, %48 : vector<1x8x128xf32>
    %c0_15 = arith.constant 0 : index
    %c0_16 = arith.constant 0 : index
    %c0_17 = arith.constant 0 : index
    %50 = vector.load %arg4[%c0_15, %c0_16, %c0_17] : memref<1x8x128xf32, #tpu.memory_space<vmem>>, vector<1x8x128xf32>
    tpu.vector_store %arg4[%c0_15, %c0_16, %c0_17], %49 {strides = array<i32>} : memref<1x8x128xf32, #tpu.memory_space<vmem>>, vector<1x8x128xf32>,
    return
  }
  func.func @transform_0(%arg0: i32, %arg1: i32) -> (i32, i32) {
    %c1_i32 = arith.constant 1 : i32
    %0 = arith.muli %arg0, %c1_i32 : i32
    %1 = arith.addi %0, %arg1 : i32
    %c0_i32 = arith.constant 0 : i32
    %c0_i32_0 = arith.constant 0 : i32
    return %1, %c0_i32 : i32, i32
  }
  func.func @transform_1(%arg0: i32, %arg1: i32) -> (i32, i32) {
    %c1_i32 = arith.constant 1 : i32
    %0 = arith.muli %arg0, %c1_i32 : i32
    %1 = arith.addi %0, %arg1 : i32
    %c0_i32 = arith.constant 0 : i32
    %c0_i32_0 = arith.constant 0 : i32
    return %1, %c0_i32 : i32, i32
  }
  func.func @transform_2(%arg0: i32, %arg1: i32) -> (i32, i32, i32) {
    %c0_i32 = arith.constant 0 : i32
    %c0_i32_0 = arith.constant 0 : i32
    %c0_i32_1 = arith.constant 0 : i32
    return %arg0, %c0_i32, %c0_i32_0 : i32, i32, i32
  }
}

</mosaic_0001>

<llo_original>
// kernel: tpu_custom_call.1
$region0: #{tpu_custom_call.1}
  #allocation0 [shape = 'u32[]', space=smem, size = 0x4, offset = 0x4, fixed_abs, tag = 'smem constant byte address 0x4 - core index']
  #allocation1 [shape = 'u32[144,128]{1,0:T(1,128)}', space=vmem, size = 0x12000, scoped, tag = 'internal scratch']
  %s0 = inlined_call_operand.hbm [shape: f32[32,128], index: 0, kind: input, shape index: {}]
  %s1 = inlined_call_operand.hbm [shape: f32[32,128], index: 1, kind: input, shape index: {}]
  %s2 = inlined_call_operand.hbm [shape: f32[2,8,128], index: 2, kind: output, shape index: {}]
  %s3 = sld [smem:[#allocation0]]
  $region53: #{tpu_custom_call.1} parent=0
    _
  %s5 = ssub.s32 1, %s3
  %s6 = scalar_select 0, %s5, %s3
  $region1: #{tpu_custom_call.1} parent=0
    #allocation2 [shape = 'u8[16384]{0}', space=vmem, size = 0x4000, scoped, tag = 'input window, operand 0']
    #allocation3 [shape = 's32[2]{0}', space=sflag, size = 0x8, scoped, tag = 'scoped memory for tpu_custom_call.1']
    #allocation4 [shape = 's32[2]{0}', space=sflag, size = 0x8, scoped, tag = 'scoped memory for tpu_custom_call.1']
    #allocation5 [shape = 'u8[16384]{0}', space=vmem, size = 0x4000, scoped, tag = 'input window, operand 1']
    #allocation6 [shape = 's32[2]{0}', space=sflag, size = 0x8, scoped, tag = 'scoped memory for tpu_custom_call.1']
    #allocation7 [shape = 'u8[8192]{0}', space=vmem, size = 0x2000, scoped, tag = 'output window, operand 0']
    %7 = vsyncpa [#allocation3], 0
    %s8 = scalar_lea.sflag [#allocation3], 1
    %9 = vsyncpa %s8, 0
    %10 = vsyncpa [#allocation6], 0
    %s11 = scalar_lea.sflag [#allocation6], 1
    %12 = vsyncpa %s11, 0
    %13 = vsyncpa [#allocation4], 0
    %s14 = scalar_lea.sflag [#allocation4], 1
    %15 = vsyncpa %s14, 0
    loop: start=0, step=1, limit=4
    $region2: #{tpu_custom_call.1} parent=1 // loop_pre_header
      _
    $region3: #{tpu_custom_call.1} parent=1 // loop_header
      %s17 = sphi 0, %s21
      %p18 = scmp.ge.s32.totalorder %s17, 4
      %s24 = sphi 0, %s36
      %s25 = sphi 0, %s32
      %s26 = sphi 0, %s24
      %s27 = sphi 0, %s25
      %s28 = sphi 0, %s26
      %s29 = sphi 0, %s27
      %s41 = sphi 0, %s43
      %s44 = sphi 0, %s41
      %s45 = sphi 0, %s44
      %s61 = sphi 0, %s45
      %s69 = sphi 0, %s71
      %s72 = sphi 0, %s69
      %s73 = sphi 0, %s72
      %s89 = sphi 0, %s73
      %s95 = sphi 0, %s97
      %s98 = sphi 0, %s95
      %s99 = sphi 0, %s98
      %s115 = sphi 0, %s99
    $region4: #{tpu_custom_call.1} parent=1 // loop_header_branch
      %20 = sbr.rel (%p18) target = $region8
    $region5: #{tpu_custom_call.1} parent=1 // loop_body
      %s22 = ssub.s32 %s17, 1
      %s23 = ssub.s32 %s17, 2
      %s30 = sadd.s32 1, %s25
      %p31 = scmp.ge.s32.totalorder %s30, 1
      %s32 = scalar_select %p31, 0, %s30
      %s33 = sadd.s32 1, %s24
      %s34 = scalar_select %p31, %s33, %s24
      %p35 = scmp.ge.s32.totalorder %s34, 2
      %s36 = scalar_select %p35, 0, %s34
      %s37 = sadd.s32 %s24, %s25
      %s38 = sadd.s32 %s36, %s32
      %s39 = ssub.s32 %s37, %s38
      %p40 = scmp.eq.s32.totalorder %s39, 0
      %s42 = sadd.s32 %s41, 1
      %s43 = scalar_select %p40, %s41, %s42
      %p46 = pneg %p40
      %p47 = scmp.eq.s32.totalorder %s17, 1
      %p48 = por %p46, %p47
      %p49 = scmp.ne.s32.totalorder %s41, %s44
      %p50 = scmp.eq.s32.totalorder %s17, 0
      %p51 = por %p49, %p50
      %p52 = scmp.ne.s32.totalorder %s41, %s44
      %p53 = scmp.eq.s32.totalorder %s22, 1
      %p54 = por %p52, %p53
      %p55 = scmp.ne.s32.totalorder %s44, %s45
      %p56 = scmp.eq.s32.totalorder %s22, 0
      %p57 = por %p55, %p56
      %p58 = scmp.ne.s32.totalorder %s44, %s45
      %p59 = scmp.eq.s32.totalorder %s23, 1
      %p60 = por %p58, %p59
      %p62 = scmp.ne.s32.totalorder %s45, %s61
      %p63 = scmp.eq.s32.totalorder %s23, 0
      %p64 = por %p62, %p63
      %s65 = sadd.s32 %s24, %s25
      %s66 = sadd.s32 %s36, %s32
      %s67 = ssub.s32 %s65, %s66
      %p68 = scmp.eq.s32.totalorder %s67, 0
      %s70 = sadd.s32 %s69, 1
      %s71 = scalar_select %p68, %s69, %s70
      %p74 = pneg %p68
      %p75 = scmp.eq.s32.totalorder %s17, 1
      %p76 = por %p74, %p75
      %p77 = scmp.ne.s32.totalorder %s69, %s72
      %p78 = scmp.eq.s32.totalorder %s17, 0
      %p79 = por %p77, %p78
      %p80 = scmp.ne.s32.totalorder %s69, %s72
      %p81 = scmp.eq.s32.totalorder %s22, 1
      %p82 = por %p80, %p81
      %p83 = scmp.ne.s32.totalorder %s72, %s73
      %p84 = scmp.eq.s32.totalorder %s22, 0
      %p85 = por %p83, %p84
      %p86 = scmp.ne.s32.totalorder %s72, %s73
      %p87 = scmp.eq.s32.totalorder %s23, 1
      %p88 = por %p86, %p87
      %p90 = scmp.ne.s32.totalorder %s73, %s89
      %p91 = scmp.eq.s32.totalorder %s23, 0
      %p92 = por %p90, %p91
      %s93 = ssub.s32 %s24, %s36
      %p94 = scmp.eq.s32.totalorder %s93, 0
      %s96 = sadd.s32 %s95, 1
      %s97 = scalar_select %p94, %s95, %s96
      %p100 = pneg %p94
      %p101 = scmp.eq.s32.totalorder %s17, 1
      %p102 = por %p100, %p101
      %p103 = scmp.ne.s32.totalorder %s95, %s98
      %p104 = scmp.eq.s32.totalorder %s17, 0
      %p105 = por %p103, %p104
      %p106 = scmp.ne.s32.totalorder %s95, %s98
      %p107 = scmp.eq.s32.totalorder %s22, 1
      %p108 = por %p106, %p107
      %p109 = scmp.ne.s32.totalorder %s98, %s99
      %p110 = scmp.eq.s32.totalorder %s22, 0
      %p111 = por %p109, %p110
      %p112 = scmp.ne.s32.totalorder %s98, %s99
      %p113 = scmp.eq.s32.totalorder %s23, 1
      %p114 = por %p112, %p113
      %p116 = scmp.ne.s32.totalorder %s99, %s115
      %p117 = scmp.eq.s32.totalorder %s23, 0
      %p118 = por %p116, %p117
      %p119 = scmp.le.s32.totalorder 1, %s17
      %p120 = scmp.lt.s32.totalorder %s17, 3
      %p121 = pnand %p119, %p120
      %p122 = pneg %p121
      // Predicated region
      $region9: #{tpu_custom_call.1} parent=5 // pred_check
        _
      $region10: #{tpu_custom_call.1} parent=5 // pred_check_branch
        %124 = sbr.rel (%p121) target = $region12
      $region11: #{tpu_custom_call.1} parent=5 // pred_region
        %s125 = ssub.s32 %s17, 1
      $region12: #{tpu_custom_call.1} parent=5 // pred_fallthru
        _
      %p126 = scmp.lt.s32.totalorder %s17, 2
      // Predicated region
      $region13: #{tpu_custom_call.1} parent=5 // pred_check
        %p127 = pneg %p126
      $region14: #{tpu_custom_call.1} parent=5 // pred_check_branch
        %129 = sbr.rel (%p127) target = $region16
      $region15: #{tpu_custom_call.1} parent=5 // pred_region
        // Predicated region
        $region17: #{tpu_custom_call.1} parent=15 // pred_check
          %p130 = pneg %p51
        $region18: #{tpu_custom_call.1} parent=15 // pred_check_branch
          %132 = sbr.rel (%p130) target = $region20
        $region19: #{tpu_custom_call.1} parent=15 // pred_region
          %s133 = sand.u32 %s41, 1
          %s134 = scalar_lea.sflag [#allocation3], %s133
          %s135 = sand.u32 %s41, 1
          %s136 = smul.addr %s135, 16
          %s137 = scalar_lea.vmem [#allocation2], %s136
          %s138 = sadd.s32 %s24, %s25
          %s139 = smul.u32 2, %s138
          %s141 = ssub.s32 256, 256
          %142 = vsyncadd %s134, %s141
          %s143 = smul.addr %s139, 128
          %s144 = scalar_lea.hbm %s0, %s143
          %s145 = sshll.u32 %s137, 4
          %s146 = int_to_ptr.vmem [resolvable:$true] %s145
          %151 = dma.hbm_to_vmem [thread:$0]  %s144, 256, %s146, %s134, 128, 128, 8
        $region20: #{tpu_custom_call.1} parent=15 // pred_fallthru
          _
        // Predicated region
        $region21: #{tpu_custom_call.1} parent=15 // pred_check
          %p152 = pneg %p79
        $region22: #{tpu_custom_call.1} parent=15 // pred_check_branch
          %154 = sbr.rel (%p152) target = $region24
        $region23: #{tpu_custom_call.1} parent=15 // pred_region
          %s155 = sand.u32 %s69, 1
          %s156 = scalar_lea.sflag [#allocation6], %s155
          %s157 = sand.u32 %s69, 1
          %s158 = smul.addr %s157, 16
          %s159 = scalar_lea.vmem [#allocation5], %s158
          %s160 = sadd.s32 %s24, %s25
          %s161 = smul.u32 2, %s160
          %s163 = ssub.s32 256, 256
          %164 = vsyncadd %s156, %s163
          %s165 = smul.addr %s161, 128
          %s166 = scalar_lea.hbm %s1, %s165
          %s167 = sshll.u32 %s159, 4
          %s168 = int_to_ptr.vmem [resolvable:$true] %s167
          %173 = dma.hbm_to_vmem [thread:$0]  %s166, 256, %s168, %s156, 128, 128, 8
        $region24: #{tpu_custom_call.1} parent=15 // pred_fallthru
          _
      $region16: #{tpu_custom_call.1} parent=5 // pred_fallthru
        _
      %p174 = scmp.le.s32.totalorder 1, %s17
      %p175 = scmp.lt.s32.totalorder %s17, 3
      %p176 = pnand %p174, %p175
      %p177 = pneg %p176
      // Predicated region
      $region25: #{tpu_custom_call.1} parent=5 // pred_check
        _
      $region26: #{tpu_custom_call.1} parent=5 // pred_check_branch
        %179 = sbr.rel (%p176) target = $region28
      $region27: #{tpu_custom_call.1} parent=5 // pred_region
        %s180 = ssub.s32 %s17, 1
        %s181 = sand.u32 %s44, 1
        %s182 = scalar_lea.sflag [#allocation3], %s181
        %s183 = sand.u32 %s44, 1
        %s184 = smul.addr %s183, 16
        %s185 = scalar_lea.vmem [#allocation2], %s184
        // Predicated region
        $region29: #{tpu_custom_call.1} parent=27 // pred_check
          %p186 = pneg %p57
        $region30: #{tpu_custom_call.1} parent=27 // pred_check_branch
          %188 = sbr.rel (%p186) target = $region32
        $region31: #{tpu_custom_call.1} parent=27 // pred_region
          %189 = dma.done %s182, 256
        $region32: #{tpu_custom_call.1} parent=27 // pred_fallthru
          _
        %s190 = sand.u32 %s72, 1
        %s191 = scalar_lea.sflag [#allocation6], %s190
        %s192 = sand.u32 %s72, 1
        %s193 = smul.addr %s192, 16
        %s194 = scalar_lea.vmem [#allocation5], %s193
        // Predicated region
        $region33: #{tpu_custom_call.1} parent=27 // pred_check
          %p195 = pneg %p85
        $region34: #{tpu_custom_call.1} parent=27 // pred_check_branch
          %197 = sbr.rel (%p195) target = $region36
        $region35: #{tpu_custom_call.1} parent=27 // pred_region
          %198 = dma.done %s191, 256
        $region36: #{tpu_custom_call.1} parent=27 // pred_fallthru
          _
        %s199 = sand.u32 %s44, 1
        %s200 = scalar_lea.sflag [#allocation3], %s199
        %s201 = sand.u32 %s44, 1
        %s202 = smul.addr %s201, 16
        %s203 = scalar_lea.vmem [#allocation2], %s202
        %p204 = pneg %p57
        %p205 = pneg %p54
        %s206 = sand.u32 %s72, 1
        %s207 = scalar_lea.sflag [#allocation6], %s206
        %s208 = sand.u32 %s72, 1
        %s209 = smul.addr %s208, 16
        %s210 = scalar_lea.vmem [#allocation5], %s209
        %p211 = pneg %p85
        %p212 = pneg %p82
        %p213 = pneg %p111
        %p214 = pneg %p108
        %s215 = sand.u32 %s98, 1
        %s216 = scalar_lea.sflag [#allocation4], %s215
        %s217 = sand.u32 %s98, 1
        %s218 = smul.addr %s217, 8
        %s219 = scalar_lea.vmem [#allocation7], %s218
        %s220 = sadd.s32 %s26, %s27
        %s221 = smul.u32 2, %s220
        %s222 = sadd.s32 %s26, %s27
        %s223 = smul.u32 2, %s222
        %p224 = scmp.eq.s32.totalorder %s27, 0
        // Predicated region
        $region37: #{tpu_custom_call.1} parent=27 // pred_check
          %p225 = pneg %p224
        $region38: #{tpu_custom_call.1} parent=27 // pred_check_branch
          %227 = sbr.rel (%p225) target = $region40
        $region39: #{tpu_custom_call.1} parent=27 // pred_region
          %228 = vst [vmem:[%s219] sm:$0xff] 0.0
        $region40: #{tpu_custom_call.1} parent=27 // pred_fallthru
          _
        %v229 = vld [vmem:[%s185] sm:$0xff]
        %v230 = vld [vmem:[%s185 + $0x8] sm:$0xff]
        %v231 = vld [vmem:[%s194] sm:$0xff]
        %v232 = vld [vmem:[%s194 + $0x8] sm:$0xff]
        %v233 = vand.u32 2147483647, %v229
        %v234 = vand.u32 2147483647, %v230
        %v235 = vsub.f32 0.0, %v233
        %v236 = vsub.f32 0.0, %v234
        %v237 = vmul.f32 %v235, 1.442695
        %v238 = vpow.pop %v237
        %v239 = vmul.f32 %v236, 1.442695
        %v240 = vpow.pop %v239
        %v241 = vmax.f32 %v229, 0.0
        %v242 = vmax.f32 %v230, 0.0
        %v243 = vmul.f32 %v229, %v231
        %v244 = vmul.f32 %v230, %v232
        %v245 = vsub.f32 %v241, %v243
        %v246 = vsub.f32 %v242, %v244
        %v247 = vadd.f32 %v238, 1.0
        %v248 = vlog2.pop %v247
        %v249 = vmul.f32 %v248, 0.6931472
        %v250 = vmul.f32 -0.5, %v238
        %v251 = vadd.f32 %v250, 1.0
        %v252 = vmul.f32 %v251, %v238
        %v253 = vand.u32 2147483647, %v238
        %vm254 = vcmp.lt.f32.partialorder %v253, 0.0004427343
        %v255 = vsel %vm254, %v252, %v249
        %v256 = vadd.f32 %v240, 1.0
        %v257 = vlog2.pop %v256
        %v258 = vmul.f32 %v257, 0.6931472
        %v259 = vmul.f32 -0.5, %v240
        %v260 = vadd.f32 %v259, 1.0
        %v261 = vmul.f32 %v260, %v240
        %v262 = vand.u32 2147483647, %v240
        %vm263 = vcmp.lt.f32.partialorder %v262, 0.0004427343
        %v264 = vsel %vm263, %v261, %v258
        %v265 = vadd.f32 %v245, %v255
        %v266 = vadd.f32 %v246, %v264
        %v267 = vadd.f32 %v238, 1.0
        %v268 = vadd.f32 %v240, 1.0
        %v269 = vrcp.pop %v267
        %v270 = vrcp.pop %v268
        %vm271 = vcmp.ge.f32.partialorder %v229, 0.0
        %vm272 = vcmp.ge.f32.partialorder %v230, 0.0
        %v273 = vmul.f32 %v238, %v269
        %v274 = vmul.f32 %v240, %v270
        %v275 = vsel %vm271, %v269, %v273
        %v276 = vsel %vm272, %v270, %v274
        %v277 = vsub.f32 %v275, %v231
        %v278 = vsub.f32 %v276, %v232
        %v279 = vsub.f32 %v277, 1.0
        %v280 = vsub.f32 %v278, 1.0
        %v281 = vmul.f32 %v279, 19.96008
        %v282 = vmul.f32 %v280, 19.96008
        %v283 = vmul.f32 %v281, 1.442695
        %v284 = vpow.pop %v283
        %v285 = vmul.f32 %v282, 1.442695
        %v286 = vpow.pop %v285
        %v287 = vsub.f32 1.0, %v284
        %v288 = vsub.f32 1.0, %v286
        %v289 = vmul.f32 %v265, %v287
        %v290 = vmul.f32 %v266, %v288
        %s291 = sadd.s32 %s26, %s27
        %s292 = smul.u32 %s291, 16
        %v293 = vlaneseq
        %v294 = vshrl.u32 %v293, 7
        %v295 = vadd.s32 %v294, 8
        %v296 = vstv %s292
        %v297 = vadd.s32 %v294, %v296
        %v298 = vadd.s32 %v295, %v296
        %v299 = vlaneseq
        %v300 = vand.u32 %v299, 127
        %v301 = vmul.u32 %v297, 128
        %v302 = vmul.u32 %v298, 128
        %v303 = vadd.s32 %v301, %v300
        %v304 = vadd.s32 %v302, %v300
        %vm305 = vcmp.lt.s32.totalorder %v303, 2048
        %vm306 = vcmp.lt.s32.totalorder %v304, 2048
        %v307 = vsel %vm305, %v289, 0.0
        %v308 = vsel %vm306, %v290, 0.0
        %v309 = vadd.f32 %v307, %v308
        %v310 = vld [vmem:[%s219] sm:$0xff]
        %v311 = vadd.f32 %v310, %v309
        %312 = vst [vmem:[%s219] sm:$0xff] %v311
        %s313 = sand.u32 %s98, 1
        %s314 = scalar_lea.sflag [#allocation4], %s313
        %s315 = sand.u32 %s98, 1
        %s316 = smul.addr %s315, 8
        %s317 = scalar_lea.vmem [#allocation7], %s316
        // Predicated region
        $region41: #{tpu_custom_call.1} parent=27 // pred_check
          %p318 = pneg %p108
        $region42: #{tpu_custom_call.1} parent=27 // pred_check_branch
          %320 = sbr.rel (%p318) target = $region44
        $region43: #{tpu_custom_call.1} parent=27 // pred_region
          %s322 = ssub.s32 128, 128
          %323 = vsyncadd %s314, %s322
          %s324 = smul.addr %s26, 128
          %s325 = scalar_lea.hbm %s2, %s324
          %s327 = sshll.u32 %s317, 4
          %s328 = int_to_ptr.vmem [resolvable:$true] %s327
          %330 = dma.vmem_to_hbm [thread:$0]  %s328, 128, %s325, %s314
        $region44: #{tpu_custom_call.1} parent=27 // pred_fallthru
          _
      $region28: #{tpu_custom_call.1} parent=5 // pred_fallthru
        _
      %p331 = scmp.le.s32.totalorder 2, %s17
      // Predicated region
      $region45: #{tpu_custom_call.1} parent=5 // pred_check
        %p332 = pneg %p331
      $region46: #{tpu_custom_call.1} parent=5 // pred_check_branch
        %334 = sbr.rel (%p332) target = $region48
      $region47: #{tpu_custom_call.1} parent=5 // pred_region
        %s335 = ssub.s32 %s17, 2
        // Predicated region
        $region49: #{tpu_custom_call.1} parent=47 // pred_check
          %p336 = pneg %p114
        $region50: #{tpu_custom_call.1} parent=47 // pred_check_branch
          %338 = sbr.rel (%p336) target = $region52
        $region51: #{tpu_custom_call.1} parent=47 // pred_region
          %s339 = sand.u32 %s99, 1
          %s340 = scalar_lea.sflag [#allocation4], %s339
          %s341 = sand.u32 %s99, 1
          %s342 = smul.addr %s341, 8
          %s343 = scalar_lea.vmem [#allocation7], %s342
          %344 = dma.done %s340, 128
        $region52: #{tpu_custom_call.1} parent=47 // pred_fallthru
          _
      $region48: #{tpu_custom_call.1} parent=5 // pred_fallthru
        _
    $region6: #{tpu_custom_call.1} parent=1 // loop_footer
      %s21 = sadd.s32 1, %s17
    $region7: #{tpu_custom_call.1} parent=1 // loop_footer_branch
      %16 = sbr.rel target = $region3
    $region8: #{tpu_custom_call.1} parent=1 // loop_exit
      _
    %345 = vsyncpa [#allocation3], 1
    %s346 = scalar_lea.sflag [#allocation3], 1
    %347 = vsyncpa %s346, 1
    %348 = vsyncpa [#allocation6], 1
    %s349 = scalar_lea.sflag [#allocation6], 1
    %350 = vsyncpa %s349, 1
    %351 = vsyncpa [#allocation4], 1
    %s352 = scalar_lea.sflag [#allocation4], 1
    %353 = vsyncpa %s352, 1

</llo_original>
